<compile_context>
chip_gen: v5e
topology: v5e:2x2
jax: 0.10.0
libtpu: 0.0.40
codegen_flags: <defaults>
</compile_context>

<pallas_src>
import jax
import jax.numpy as jnp
from jax.experimental import pallas as pl
from jax.experimental.pallas import tpu as pltpu


def _mlp_kernel(x_ref, w1_ref, b1_ref, w2_ref, b2_ref, o_ref):
    # x_ref:  (TM, 784) f32      w1_ref: (784, Hp) bf16   b1_ref: (1, Hp) f32
    # w2_ref: (Hp, 10)  bf16     b2_ref: (1, 10)   f32    o_ref:  (TM, 10) f32
    # In-kernel bf16 cast of x (single f32 read of x from HBM, no extra pass).
    x = x_ref[...].astype(jnp.bfloat16)
    # First MXU pass: bf16 inputs, f32 accumulation; bias add in f32 on the VPU.
    h1 = jnp.dot(x, w1_ref[...], preferred_element_type=jnp.float32) + b1_ref[...]
    # Second MXU pass: requantize activation to bf16 for MXU rate, f32 accumulate.
    out = jnp.dot(h1.astype(jnp.bfloat16), w2_ref[...],
                  preferred_element_type=jnp.float32) + b2_ref[...]
    o_ref[...] = out.astype(o_ref.dtype)


def prepare_params(w1, b1, w2, b2):
    """One-time parameter prep (hoisted out of the forward path).

    Pads the hidden dim 200 -> 256 (128-aligned, numerically exact since the
    padded columns/rows are zero) and quantizes weights to bf16.  Call once
    and reuse the result for every forward call.
    """
    in_dim, hidden = w1.shape
    out_dim = w2.shape[1]
    h_pad = ((hidden + 127) // 128) * 128
    w1p = jnp.zeros((in_dim, h_pad), jnp.bfloat16).at[:, :hidden].set(
        w1.astype(jnp.bfloat16))
    b1p = jnp.zeros((1, h_pad), jnp.float32).at[:, :hidden].set(
        b1.reshape(1, hidden).astype(jnp.float32))
    w2p = jnp.zeros((h_pad, out_dim), jnp.bfloat16).at[:hidden, :].set(
        w2.astype(jnp.bfloat16))
    b2p = b2.reshape(1, out_dim).astype(jnp.float32)
    return w1p, b1p, w2p, b2p


def mlp_forward(x, w1p, b1p, w2p, b2p):
    """Forward pass of _MLP_1 with pre-prepared (padded bf16) parameters.

    x:   (B, 1, 28, 28) or (B, 784) f32 (flattened like x.view(B, -1))
    w1p: (784, Hp) bf16   b1p: (1, Hp) f32
    w2p: (Hp, 10)  bf16   b2p: (1, 10) f32
    returns (B, 10) f32
    """
    B = x.shape[0]
    x_flat = x.reshape(B, -1).astype(jnp.float32)   # f32 straight into the kernel
    in_dim = x_flat.shape[1]          # 784
    h_pad = w1p.shape[1]              # 256
    out_dim = w2p.shape[1]            # 10

    # ---- batch tiling ----
    # TM multiple of 8 (or == B when B <= 8), capped at 1024.  For B > 8 pick
    # TM ~ cdiv(B, 2) so the grid has >= 2 steps and v7x can split the batch
    # tiles across both TensorCores.  Ragged last tile (B % TM != 0) is handled
    # by Pallas directly — no padded copy of x.
    cap = 1024
    if B <= 8:
        tm = B
    else:
        half = -(-B // 2)                          # cdiv(B, 2)
        tm = min(cap, ((half + 7) // 8) * 8)
    grid = (pl.cdiv(B, tm),)

    # ---- right-sized VMEM budget ----
    # double-buffered weights/biases + double-buffered f32 x tiles + out tiles
    # (lane-padded to 128 in VMEM) + f32/bf16 h1 intermediates + headroom.
    vmem_limit = int(
        2 * (in_dim * h_pad * 2 + h_pad * out_dim * 2      # bf16 weights
             + h_pad * 4 + out_dim * 4)                     # f32 biases
        + 2 * tm * in_dim * 4                               # f32 x tiles (dbl-buf)
        + 2 * tm * 128 * 4                                  # out tiles (lane-padded)
        + tm * h_pad * 6                                    # h1 f32 + bf16 requant
        + (8 << 20)                                         # headroom
    )

    out = pl.pallas_call(
        _mlp_kernel,
        out_shape=jax.ShapeDtypeStruct((B, out_dim), jnp.float32),
        grid_spec=pltpu.PrefetchScalarGridSpec(
            num_scalar_prefetch=0,
            grid=grid,
            in_specs=[
                pl.BlockSpec((tm, in_dim), lambda i: (i, 0)),      # x: streamed per tile
                pl.BlockSpec((in_dim, h_pad), lambda i: (0, 0)),   # w1: VMEM-resident
                pl.BlockSpec((1, h_pad), lambda i: (0, 0)),        # b1: VMEM-resident
                pl.BlockSpec((h_pad, out_dim), lambda i: (0, 0)),  # w2: VMEM-resident
                pl.BlockSpec((1, out_dim), lambda i: (0, 0)),      # b2: VMEM-resident
            ],
            out_specs=pl.BlockSpec((tm, out_dim), lambda i: (i, 0)),
        ),
        compiler_params=pltpu.CompilerParams(
            dimension_semantics=("parallel",),   # v7x: shard batch tiles over 2 TCs
            vmem_limit_bytes=vmem_limit,
        ),
    )(x_flat, w1p, b1p, w2p, b2p)

    return out


def init_params(key, in_dim=784, hidden_dim=200, out_dim=10):
    """Deterministic init mimicking torch.nn.Linear default (U[-1/sqrt(fan_in), +])."""
    k1, k2, k3, k4 = jax.random.split(key, 4)
    bound1 = 1.0 / jnp.sqrt(in_dim)
    bound2 = 1.0 / jnp.sqrt(hidden_dim)
    w1 = jax.random.uniform(k1, (in_dim, hidden_dim), jnp.float32, -bound1, bound1)
    b1 = jax.random.uniform(k2, (1, hidden_dim), jnp.float32, -bound1, bound1)
    w2 = jax.random.uniform(k3, (hidden_dim, out_dim), jnp.float32, -bound2, bound2)
    b2 = jax.random.uniform(k4, (1, out_dim), jnp.float32, -bound2, bound2)
    return w1, b1, w2, b2


if __name__ == "__main__":
    key = jax.random.PRNGKey(0)
    k_x, k_p = jax.random.split(key)

    B, H, W = 2, 28, 28            # MNIST-like input implied by Linear(784, ...)
    hidden_dim = 200

    x = jax.random.normal(k_x, (B, 1, H, W), jnp.float32)   # NCHW like PyTorch
    w1, b1, w2, b2 = init_params(k_p, in_dim=H * W, hidden_dim=hidden_dim, out_dim=10)

    # One-time parameter prep (pad + bf16 cast), reused across forward calls.
    w1p, b1p, w2p, b2p = prepare_params(w1, b1, w2, b2)

    fwd = jax.jit(mlp_forward)
    out = fwd(x, w1p, b1p, w2p, b2p)
    jax.block_until_ready(out)
    assert out.shape == (B, 10)

    # reference 1: identical bf16-input / f32-accumulate math in plain JAX
    x_flat = x.reshape(B, -1)
    h_ref = jnp.dot(x_flat.astype(jnp.bfloat16), w1.astype(jnp.bfloat16),
                    preferred_element_type=jnp.float32) + b1
    ref_bf16 = jnp.dot(h_ref.astype(jnp.bfloat16), w2.astype(jnp.bfloat16),
                       preferred_element_type=jnp.float32) + b2
    assert jnp.allclose(out, ref_bf16, atol=2e-2, rtol=2e-2)

    # reference 2: pure-f32 math (only bf16 quantization error expected)
    ref_f32 = (x_flat @ w1 + b1) @ w2 + b2
    assert jnp.allclose(out, ref_f32, atol=6e-2, rtol=6e-2)

    print("KERNEL_OK")
</pallas_src>

<mosaic_0001>
module attributes {stable_mosaic.version = 11 : i64} {
  func.func @_mlp_kernel(%arg0: i32, %arg1: memref<2x784xf32, #tpu.memory_space<vmem>>, %arg2: memref<784x256xbf16, #tpu.memory_space<vmem>>, %arg3: memref<1x256xf32, #tpu.memory_space<vmem>>, %arg4: memref<256x10xbf16, #tpu.memory_space<vmem>>, %arg5: memref<1x10xf32, #tpu.memory_space<vmem>>, %arg6: memref<2x10xf32, #tpu.memory_space<vmem>>) attributes {dimension_semantics = [#tpu.dimension_semantics<parallel>], iteration_bounds = array<i64: 1>, scalar_prefetch = 0 : i64, scratch_operands = 0 : i64, tpu.core_type = #tpu.core_type<tc>, window_params = [{transform_indices = @transform_0, window_bounds = array<i64: 2, 784>}, {pipeline_mode = #tpu.pipeline_mode<synchronous>, transform_indices = @transform_1, window_bounds = array<i64: 784, 256>}, {pipeline_mode = #tpu.pipeline_mode<synchronous>, transform_indices = @transform_2, window_bounds = array<i64: 1, 256>}, {pipeline_mode = #tpu.pipeline_mode<synchronous>, transform_indices = @transform_3, window_bounds = array<i64: 256, 10>}, {pipeline_mode = #tpu.pipeline_mode<synchronous>, transform_indices = @transform_4, window_bounds = array<i64: 1, 10>}, {transform_indices = @transform_5, window_bounds = array<i64: 2, 10>}]} {
    %c0 = arith.constant 0 : index
    %c0_0 = arith.constant 0 : index
    %0 = vector.load %arg1[%c0, %c0_0] : memref<2x784xf32, #tpu.memory_space<vmem>>, vector<2x784xf32>
    %1 = arith.truncf %0 : vector<2x784xf32> to vector<2x784xbf16>
    %c0_1 = arith.constant 0 : index
    %c0_2 = arith.constant 0 : index
    %2 = vector.load %arg2[%c0_1, %c0_2] : memref<784x256xbf16, #tpu.memory_space<vmem>>, vector<784x256xbf16>
    %cst = arith.constant dense<0.000000e+00> : vector<2x256xf32>
    %3 = tpu.matmul %1, %2, %cst {dimension_numbers = #tpu.dot_dimension_numbers<[1], [0], [0], [1], [0, 0, 1, 1], [], []>} : vector<2x784xbf16>, vector<784x256xbf16>, vector<2x256xf32> -> vector<2x256xf32>
    %c0_3 = arith.constant 0 : index
    %c0_4 = arith.constant 0 : index
    %4 = vector.load %arg3[%c0_3, %c0_4] : memref<1x256xf32, #tpu.memory_space<vmem>>, vector<1x256xf32>
    %5 = vector.broadcast %4 : vector<1x256xf32> to vector<2x256xf32>
    %6 = arith.addf %3, %5 : vector<2x256xf32>
    %7 = arith.truncf %6 : vector<2x256xf32> to vector<2x256xbf16>
    %c0_5 = arith.constant 0 : index
    %c0_6 = arith.constant 0 : index
    %8 = vector.load %arg4[%c0_5, %c0_6] : memref<256x10xbf16, #tpu.memory_space<vmem>>, vector<256x10xbf16>
    %cst_7 = arith.constant dense<0.000000e+00> : vector<2x10xf32>
    %9 = tpu.matmul %7, %8, %cst_7 {dimension_numbers = #tpu.dot_dimension_numbers<[1], [0], [0], [1], [0, 0, 1, 1], [], []>} : vector<2x256xbf16>, vector<256x10xbf16>, vector<2x10xf32> -> vector<2x10xf32>
    %c0_8 = arith.constant 0 : index
    %c0_9 = arith.constant 0 : index
    %10 = vector.load %arg5[%c0_8, %c0_9] : memref<1x10xf32, #tpu.memory_space<vmem>>, vector<1x10xf32>
    %11 = vector.broadcast %10 : vector<1x10xf32> to vector<2x10xf32>
    %12 = arith.addf %9, %11 : vector<2x10xf32>
    %c0_10 = arith.constant 0 : index
    %c0_11 = arith.constant 0 : index
    %13 = vector.load %arg6[%c0_10, %c0_11] : memref<2x10xf32, #tpu.memory_space<vmem>>, vector<2x10xf32>
    tpu.vector_store %arg6[%c0_10, %c0_11], %12 {strides = array<i32>} : memref<2x10xf32, #tpu.memory_space<vmem>>, vector<2x10xf32>,
    return
  }
  func.func @transform_0(%arg0: i32) -> (i32, i32) {
    %c0_i32 = arith.constant 0 : i32
    %c0_i32_0 = arith.constant 0 : i32
    return %arg0, %c0_i32 : i32, i32
  }
  func.func @transform_1(%arg0: i32) -> (i32, i32) {
    %c0_i32 = arith.constant 0 : i32
    %c0_i32_0 = arith.constant 0 : i32
    %c0_i32_1 = arith.constant 0 : i32
    return %c0_i32, %c0_i32_0 : i32, i32
  }
  func.func @transform_2(%arg0: i32) -> (i32, i32) {
    %c0_i32 = arith.constant 0 : i32
    %c0_i32_0 = arith.constant 0 : i32
    %c0_i32_1 = arith.constant 0 : i32
    return %c0_i32, %c0_i32_0 : i32, i32
  }
  func.func @transform_3(%arg0: i32) -> (i32, i32) {
    %c0_i32 = arith.constant 0 : i32
    %c0_i32_0 = arith.constant 0 : i32
    %c0_i32_1 = arith.constant 0 : i32
    return %c0_i32, %c0_i32_0 : i32, i32
  }
  func.func @transform_4(%arg0: i32) -> (i32, i32) {
    %c0_i32 = arith.constant 0 : i32
    %c0_i32_0 = arith.constant 0 : i32
    %c0_i32_1 = arith.constant 0 : i32
    return %c0_i32, %c0_i32_0 : i32, i32
  }
  func.func @transform_5(%arg0: i32) -> (i32, i32) {
    %c0_i32 = arith.constant 0 : i32
    %c0_i32_0 = arith.constant 0 : i32
    return %arg0, %c0_i32 : i32, i32
  }
}

</mosaic_0001>

<llo_original>
// kernel: mlp_forward.1
$region0: #{mlp_forward.1}
  #allocation0 [shape = 'u32[]', space=smem, size = 0x4, offset = 0x4, fixed_abs, tag = 'smem constant byte address 0x4 - core index']
  #allocation1 [shape = 'u32[72,128]{1,0:T(1,128)}', space=vmem, size = 0x9000, scoped, tag = 'internal scratch']
  %s0 = inlined_call_operand.vmem [shape: f32[2,784], index: 0, kind: input, shape index: {}]
  %s1 = inlined_call_operand.hbm [shape: bf16[784,256], index: 1, kind: input, shape index: {}]
  %s2 = inlined_call_operand.vmem [shape: f32[1,256], index: 2, kind: input, shape index: {}]
  %s3 = inlined_call_operand.vmem [shape: bf16[256,10], index: 3, kind: input, shape index: {}]
  %s4 = inlined_call_operand.vmem [shape: f32[1,10], index: 4, kind: input, shape index: {}]
  %s5 = inlined_call_operand.hbm [shape: f32[2,10], index: 5, kind: output, shape index: {}]
  %s6 = sld [smem:[#allocation0]]
  $region34: #{mlp_forward.1} parent=0
    _
  %s8 = ssub.s32 1, %s6
  %s9 = scalar_select 0, %s8, %s6
  $region1: #{mlp_forward.1} parent=0
    #allocation2 [shape = 'u8[401408]{0}', space=vmem, size = 0x62000, scoped, tag = 'input window, operand 1, single buffered']
    #allocation3 [shape = 's32[1]{0}', space=sflag, size = 0x4, scoped, tag = 'scoped memory for mlp_forward.1']
    #allocation4 [shape = 's32[1]{0}', space=sflag, size = 0x4, scoped, tag = 'scoped memory for mlp_forward.1']
    #allocation5 [shape = 'u8[1024]{0}', space=vmem, size = 0x400, scoped, tag = 'output window, operand 0, single buffered']
    %10 = vsyncpa [#allocation3], 0
    %11 = vsyncpa [#allocation4], 0
    // Predicated region
    $region2: #{mlp_forward.1} parent=1 // pred_check
      _
    $region3: #{mlp_forward.1} parent=1 // pred_check_branch
      %13 = sbr.rel (0) target = $region5
    $region4: #{mlp_forward.1} parent=1 // pred_region
      _
    $region5: #{mlp_forward.1} parent=1 // pred_fallthru
      _
    // Predicated region
    $region6: #{mlp_forward.1} parent=1 // pred_check
      _
    $region7: #{mlp_forward.1} parent=1 // pred_check_branch
      %15 = sbr.rel (0) target = $region9
    $region8: #{mlp_forward.1} parent=1 // pred_region
      %17 = vsyncadd [#allocation3], 0
      %s18 = sshll.u32 %s1, 4
      %s19 = int_to_ptr.hbm [resolvable:$true] %s18
      %s20 = sshll.u32 [#allocation2], 4
      %s21 = int_to_ptr.vmem [resolvable:$true] %s20
      %26 = dma.hbm_to_vmem [thread:$0]  %s19, 12544, %s21, [#allocation3], 128, 128, 8
    $region9: #{mlp_forward.1} parent=1 // pred_fallthru
      _
    // Predicated region
    $region10: #{mlp_forward.1} parent=1 // pred_check
      _
    $region11: #{mlp_forward.1} parent=1 // pred_check_branch
      %28 = sbr.rel (0) target = $region13
    $region12: #{mlp_forward.1} parent=1 // pred_region
      _
    $region13: #{mlp_forward.1} parent=1 // pred_fallthru
      _
    // Predicated region
    $region14: #{mlp_forward.1} parent=1 // pred_check
      _
    $region15: #{mlp_forward.1} parent=1 // pred_check_branch
      %30 = sbr.rel (0) target = $region17
    $region16: #{mlp_forward.1} parent=1 // pred_region
      _
    $region17: #{mlp_forward.1} parent=1 // pred_fallthru
      _
    // Predicated region
    $region18: #{mlp_forward.1} parent=1 // pred_check
      _
    $region19: #{mlp_forward.1} parent=1 // pred_check_branch
      %32 = sbr.rel (0) target = $region21
    $region20: #{mlp_forward.1} parent=1 // pred_region
      _
    $region21: #{mlp_forward.1} parent=1 // pred_fallthru
      _
    // Predicated region
    $region22: #{mlp_forward.1} parent=1 // pred_check
      _
    $region23: #{mlp_forward.1} parent=1 // pred_check_branch
      %34 = sbr.rel (0) target = $region25
    $region24: #{mlp_forward.1} parent=1 // pred_region
      %36 = dma.done [#allocation3], 12544
    $region25: #{mlp_forward.1} parent=1 // pred_fallthru
      _
    %v38 = vld [vmem:[%s0] sm:$0xff]
    %v39 = vld [vmem:[%s0 + $0x8] sm:$0x3f]
    %42 = vst [vmem:[#allocation1] ss:$4 sm:$0xff] %v38
    %s43 = scalar_lea.vmem [#allocation1], 32
    %44 = vst [vmem:[%s43] ss:$4 sm:$0xff] %v39
    %v45 = vld.sshfl [vmem:[#allocation1] sm:$0xff pattern:$0x73625140]
    %v46 = vld.sshfl [vmem:[#allocation1 + $0x8] sm:$0xff pattern:$0x73625140]
    %v47 = vld.sshfl [vmem:[#allocation1 + $0x10] sm:$0xff pattern:$0x73625140]
    %v48 = vld.sshfl [vmem:[#allocation1 + $0x18] sm:$0xff pattern:$0x73625140]
    %v49 = vld.sshfl [vmem:[#allocation1 + $0x20] sm:$0xff pattern:$0x73625140]
    %v50 = vld.sshfl [vmem:[#allocation1 + $0x28] sm:$0xff pattern:$0x73625140]
    %v51 = vld.sshfl [vmem:[#allocation1 + $0x30] sm:$0xff pattern:$0x73625140]
    %v59 = vpack.c.bf16 %v45, %v45
    %v60 = vpack.c.bf16 %v46, %v46
    %v61 = vpack.c.bf16 %v47, %v47
    %v62 = vpack.c.bf16 %v48, %v48
    %v63 = vpack.c.bf16 %v49, %v49
    %v64 = vpack.c.bf16 %v50, %v50
    %v65 = vpack.c.bf16 %v51, %v51
    %v66 = vld [vmem:[#allocation2] sm:$0xff]
    %v67 = vld [vmem:[#allocation2 + $0x8] sm:$0xff]
    %v68 = vld [vmem:[#allocation2 + $0x10] sm:$0xff]
    %v69 = vld [vmem:[#allocation2 + $0x18] sm:$0xff]
    %v70 = vld [vmem:[#allocation2 + $0x20] sm:$0xff]
    %v71 = vld [vmem:[#allocation2 + $0x28] sm:$0xff]
    %v72 = vld [vmem:[#allocation2 + $0x30] sm:$0xff]
    %v73 = vld [vmem:[#allocation2 + $0x38] sm:$0xff]
    %v74 = vld [vmem:[#allocation2 + $0x40] sm:$0xff]
    %v75 = vld [vmem:[#allocation2 + $0x48] sm:$0xff]
    %v76 = vld [vmem:[#allocation2 + $0x50] sm:$0xff]
    %v77 = vld [vmem:[#allocation2 + $0x58] sm:$0xff]
    %v78 = vld [vmem:[#allocation2 + $0x60] sm:$0xff]
    %v79 = vld [vmem:[#allocation2 + $0x68] sm:$0xff]
    %v80 = vld [vmem:[#allocation2 + $0x70] sm:$0xff]
    %v81 = vld [vmem:[#allocation2 + $0x78] sm:$0xff]
    %v82 = vld [vmem:[#allocation2 + $0x80] sm:$0xff]
    %v83 = vld [vmem:[#allocation2 + $0x88] sm:$0xff]
    %v84 = vld [vmem:[#allocation2 + $0x90] sm:$0xff]
    %v85 = vld [vmem:[#allocation2 + $0x98] sm:$0xff]
    %v86 = vld [vmem:[#allocation2 + $0xa0] sm:$0xff]
    %v87 = vld [vmem:[#allocation2 + $0xa8] sm:$0xff]
    %v88 = vld [vmem:[#allocation2 + $0xb0] sm:$0xff]
    %v89 = vld [vmem:[#allocation2 + $0xb8] sm:$0xff]
    %v90 = vld [vmem:[#allocation2 + $0xc0] sm:$0xff]
    %v91 = vld [vmem:[#allocation2 + $0xc8] sm:$0xff]
    %v92 = vld [vmem:[#allocation2 + $0xd0] sm:$0xff]
    %v93 = vld [vmem:[#allocation2 + $0xd8] sm:$0xff]
    %v94 = vld [vmem:[#allocation2 + $0xe0] sm:$0xff]
    %v95 = vld [vmem:[#allocation2 + $0xe8] sm:$0xff]
    %v96 = vld [vmem:[#allocation2 + $0xf0] sm:$0xff]
    %v97 = vld [vmem:[#allocation2 + $0xf8] sm:$0xff]
    %v98 = vld [vmem:[#allocation2 + $0x100] sm:$0xff]
    %v99 = vld [vmem:[#allocation2 + $0x108] sm:$0xff]
    %v100 = vld [vmem:[#allocation2 + $0x110] sm:$0xff]
    %v101 = vld [vmem:[#allocation2 + $0x118] sm:$0xff]
    %v102 = vld [vmem:[#allocation2 + $0x120] sm:$0xff]
    %v103 = vld [vmem:[#allocation2 + $0x128] sm:$0xff]
    %v104 = vld [vmem:[#allocation2 + $0x130] sm:$0xff]
    %v105 = vld [vmem:[#allocation2 + $0x138] sm:$0xff]
    %v106 = vld [vmem:[#allocation2 + $0x140] sm:$0xff]
    %v107 = vld [vmem:[#allocation2 + $0x148] sm:$0xff]
    %v108 = vld [vmem:[#allocation2 + $0x150] sm:$0xff]
    %v109 = vld [vmem:[#allocation2 + $0x158] sm:$0xff]
    %v110 = vld [vmem:[#allocation2 + $0x160] sm:$0xff]
    %v111 = vld [vmem:[#allocation2 + $0x168] sm:$0xff]
    %v112 = vld [vmem:[#allocation2 + $0x170] sm:$0xff]
    %v113 = vld [vmem:[#allocation2 + $0x178] sm:$0xff]
    %v114 = vld [vmem:[#allocation2 + $0x180] sm:$0xff]
    %v115 = vld [vmem:[#allocation2 + $0x188] sm:$0xff]
    %v116 = vld [vmem:[#allocation2 + $0x190] sm:$0xff]
    %v117 = vld [vmem:[#allocation2 + $0x198] sm:$0xff]
    %v118 = vld [vmem:[#allocation2 + $0x1a0] sm:$0xff]
    %v119 = vld [vmem:[#allocation2 + $0x1a8] sm:$0xff]
    %v120 = vld [vmem:[#allocation2 + $0x1b0] sm:$0xff]
    %v121 = vld [vmem:[#allocation2 + $0x1b8] sm:$0xff]
    %v122 = vld [vmem:[#allocation2 + $0x1c0] sm:$0xff]
    %v123 = vld [vmem:[#allocation2 + $0x1c8] sm:$0xff]
    %v124 = vld [vmem:[#allocation2 + $0x1d0] sm:$0xff]
    %v125 = vld [vmem:[#allocation2 + $0x1d8] sm:$0xff]
    %v126 = vld [vmem:[#allocation2 + $0x1e0] sm:$0xff]
    %v127 = vld [vmem:[#allocation2 + $0x1e8] sm:$0xff]
    %v128 = vld [vmem:[#allocation2 + $0x1f0] sm:$0xff]
    %v129 = vld [vmem:[#allocation2 + $0x1f8] sm:$0xff]
    %v130 = vld [vmem:[#allocation2 + $0x200] sm:$0xff]
    %v131 = vld [vmem:[#allocation2 + $0x208] sm:$0xff]
    %v132 = vld [vmem:[#allocation2 + $0x210] sm:$0xff]
    %v133 = vld [vmem:[#allocation2 + $0x218] sm:$0xff]
    %v134 = vld [vmem:[#allocation2 + $0x220] sm:$0xff]
    %v135 = vld [vmem:[#allocation2 + $0x228] sm:$0xff]
    %v136 = vld [vmem:[#allocation2 + $0x230] sm:$0xff]
    %v137 = vld [vmem:[#allocation2 + $0x238] sm:$0xff]
    %v138 = vld [vmem:[#allocation2 + $0x240] sm:$0xff]
    %v139 = vld [vmem:[#allocation2 + $0x248] sm:$0xff]
    %v140 = vld [vmem:[#allocation2 + $0x250] sm:$0xff]
    %v141 = vld [vmem:[#allocation2 + $0x258] sm:$0xff]
    %v142 = vld [vmem:[#allocation2 + $0x260] sm:$0xff]
    %v143 = vld [vmem:[#allocation2 + $0x268] sm:$0xff]
    %v144 = vld [vmem:[#allocation2 + $0x270] sm:$0xff]
    %v145 = vld [vmem:[#allocation2 + $0x278] sm:$0xff]
    %v146 = vld [vmem:[#allocation2 + $0x280] sm:$0xff]
    %v147 = vld [vmem:[#allocation2 + $0x288] sm:$0xff]
    %v148 = vld [vmem:[#allocation2 + $0x290] sm:$0xff]
    %v149 = vld [vmem:[#allocation2 + $0x298] sm:$0xff]
    %v150 = vld [vmem:[#allocation2 + $0x2a0] sm:$0xff]
    %v151 = vld [vmem:[#allocation2 + $0x2a8] sm:$0xff]
    %v152 = vld [vmem:[#allocation2 + $0x2b0] sm:$0xff]
    %v153 = vld [vmem:[#allocation2 + $0x2b8] sm:$0xff]
    %v154 = vld [vmem:[#allocation2 + $0x2c0] sm:$0xff]
    %v155 = vld [vmem:[#allocation2 + $0x2c8] sm:$0xff]
    %v156 = vld [vmem:[#allocation2 + $0x2d0] sm:$0xff]
    %v157 = vld [vmem:[#allocation2 + $0x2d8] sm:$0xff]
    %v158 = vld [vmem:[#allocation2 + $0x2e0] sm:$0xff]
    %v159 = vld [vmem:[#allocation2 + $0x2e8] sm:$0xff]
    %v160 = vld [vmem:[#allocation2 + $0x2f0] sm:$0xff]
    %v161 = vld [vmem:[#allocation2 + $0x2f8] sm:$0xff]
    %v162 = vld [vmem:[#allocation2 + $0x300] sm:$0xff]
    %v163 = vld [vmem:[#allocation2 + $0x308] sm:$0xff]
    %v164 = vld [vmem:[%s2] sm:$0x3]
    %v166 = vperm.slane %v164, 0
    %v167 = vperm.slane %v164, 1
    %v268 = vunpack.c.l.b16 %v66
    %v269 = vunpack.c.h.b16 %v66
    %v270 = vunpack.c.l.b16 %v67
    %v271 = vunpack.c.h.b16 %v67
    %v272 = vunpack.c.l.b16 %v68
    %v273 = vunpack.c.h.b16 %v68
    %v274 = vunpack.c.l.b16 %v69
    %v275 = vunpack.c.h.b16 %v69
    %v276 = vunpack.c.l.b16 %v70
    %v277 = vunpack.c.h.b16 %v70
    %v278 = vunpack.c.l.b16 %v71
    %v279 = vunpack.c.h.b16 %v71
    %v280 = vunpack.c.l.b16 %v72
    %v281 = vunpack.c.h.b16 %v72
    %v282 = vunpack.c.l.b16 %v73
    %v283 = vunpack.c.h.b16 %v73
    %v284 = vunpack.c.l.b16 %v74
    %v285 = vunpack.c.h.b16 %v74
    %v286 = vunpack.c.l.b16 %v75
    %v287 = vunpack.c.h.b16 %v75
    %v288 = vunpack.c.l.b16 %v76
    %v289 = vunpack.c.h.b16 %v76
    %v290 = vunpack.c.l.b16 %v77
    %v291 = vunpack.c.h.b16 %v77
    %v292 = vunpack.c.l.b16 %v78
    %v293 = vunpack.c.h.b16 %v78
    %v294 = vunpack.c.l.b16 %v79
    %v295 = vunpack.c.h.b16 %v79
    %v296 = vunpack.c.l.b16 %v80
    %v297 = vunpack.c.h.b16 %v80
    %v298 = vunpack.c.l.b16 %v81
    %v299 = vunpack.c.h.b16 %v81
    %v300 = vunpack.c.l.b16 %v82
    %v301 = vunpack.c.h.b16 %v82
    %v302 = vunpack.c.l.b16 %v83
    %v303 = vunpack.c.h.b16 %v83
    %v304 = vunpack.c.l.b16 %v84
    %v305 = vunpack.c.h.b16 %v84
    %v306 = vunpack.c.l.b16 %v85
    %v307 = vunpack.c.h.b16 %v85
    %v308 = vunpack.c.l.b16 %v86
    %v309 = vunpack.c.h.b16 %v86
    %v310 = vunpack.c.l.b16 %v87
    %v311 = vunpack.c.h.b16 %v87
    %v312 = vunpack.c.l.b16 %v88
    %v313 = vunpack.c.h.b16 %v88
    %v314 = vunpack.c.l.b16 %v89
    %v315 = vunpack.c.h.b16 %v89
    %v316 = vunpack.c.l.b16 %v90
    %v317 = vunpack.c.h.b16 %v90
    %v318 = vunpack.c.l.b16 %v91
    %v319 = vunpack.c.h.b16 %v91
    %v320 = vunpack.c.l.b16 %v92
    %v321 = vunpack.c.h.b16 %v92
    %v322 = vunpack.c.l.b16 %v93
    %v323 = vunpack.c.h.b16 %v93
    %v324 = vunpack.c.l.b16 %v94
    %v325 = vunpack.c.h.b16 %v94
    %v326 = vunpack.c.l.b16 %v95
    %v327 = vunpack.c.h.b16 %v95
    %v328 = vunpack.c.l.b16 %v96
    %v329 = vunpack.c.h.b16 %v96
    %v330 = vunpack.c.l.b16 %v97
    %v331 = vunpack.c.h.b16 %v97
    %v332 = vunpack.c.l.b16 %v98
    %v333 = vunpack.c.h.b16 %v98
    %v334 = vunpack.c.l.b16 %v99
    %v335 = vunpack.c.h.b16 %v99
    %v336 = vunpack.c.l.b16 %v100
    %v337 = vunpack.c.h.b16 %v100
    %v338 = vunpack.c.l.b16 %v101
    %v339 = vunpack.c.h.b16 %v101
    %v340 = vunpack.c.l.b16 %v102
    %v341 = vunpack.c.h.b16 %v102
    %v342 = vunpack.c.l.b16 %v103
    %v343 = vunpack.c.h.b16 %v103
    %v344 = vunpack.c.l.b16 %v104
    %v345 = vunpack.c.h.b16 %v104
    %v346 = vunpack.c.l.b16 %v105
    %v347 = vunpack.c.h.b16 %v105
    %v348 = vunpack.c.l.b16 %v106
    %v349 = vunpack.c.h.b16 %v106
    %v350 = vunpack.c.l.b16 %v107
    %v351 = vunpack.c.h.b16 %v107
    %v352 = vunpack.c.l.b16 %v108
    %v353 = vunpack.c.h.b16 %v108
    %v354 = vunpack.c.l.b16 %v109
    %v355 = vunpack.c.h.b16 %v109
    %v356 = vunpack.c.l.b16 %v110
    %v357 = vunpack.c.h.b16 %v110
    %v358 = vunpack.c.l.b16 %v111
    %v359 = vunpack.c.h.b16 %v111
    %v360 = vunpack.c.l.b16 %v112
    %v361 = vunpack.c.h.b16 %v112
    %v362 = vunpack.c.l.b16 %v113
    %v363 = vunpack.c.h.b16 %v113
    %v364 = vunpack.c.l.b16 %v114
    %v365 = vunpack.c.h.b16 %v114
    %v366 = vunpack.c.l.b16 %v115
    %v367 = vunpack.c.h.b16 %v115
    %v368 = vunpack.c.l.b16 %v116
    %v369 = vunpack.c.h.b16 %v116
    %v370 = vunpack.c.l.b16 %v117
    %v371 = vunpack.c.h.b16 %v117
    %v372 = vunpack.c.l.b16 %v118
    %v373 = vunpack.c.h.b16 %v118
    %v374 = vunpack.c.l.b16 %v119
    %v375 = vunpack.c.h.b16 %v119
    %v376 = vunpack.c.l.b16 %v120
    %v377 = vunpack.c.h.b16 %v120
    %v378 = vunpack.c.l.b16 %v121
    %v379 = vunpack.c.h.b16 %v121
    %v380 = vunpack.c.l.b16 %v122
    %v381 = vunpack.c.h.b16 %v122
    %v382 = vunpack.c.l.b16 %v123
    %v383 = vunpack.c.h.b16 %v123
    %v384 = vunpack.c.l.b16 %v124
    %v385 = vunpack.c.h.b16 %v124
    %v386 = vunpack.c.l.b16 %v125
    %v387 = vunpack.c.h.b16 %v125
    %v388 = vunpack.c.l.b16 %v126
    %v389 = vunpack.c.h.b16 %v126
    %v390 = vunpack.c.l.b16 %v127
    %v391 = vunpack.c.h.b16 %v127
    %v392 = vunpack.c.l.b16 %v128
    %v393 = vunpack.c.h.b16 %v128
    %v394 = vunpack.c.l.b16 %v129
    %v395 = vunpack.c.h.b16 %v129
    %v396 = vunpack.c.l.b16 %v130
    %v397 = vunpack.c.h.b16 %v130
    %v398 = vunpack.c.l.b16 %v131
    %v399 = vunpack.c.h.b16 %v131
    %v400 = vunpack.c.l.b16 %v132
    %v401 = vunpack.c.h.b16 %v132
    %v402 = vunpack.c.l.b16 %v133
    %v403 = vunpack.c.h.b16 %v133
    %v404 = vunpack.c.l.b16 %v134
    %v405 = vunpack.c.h.b16 %v134
    %v406 = vunpack.c.l.b16 %v135
    %v407 = vunpack.c.h.b16 %v135
    %v408 = vunpack.c.l.b16 %v136
    %v409 = vunpack.c.h.b16 %v136
    %v410 = vunpack.c.l.b16 %v137
    %v411 = vunpack.c.h.b16 %v137
    %v412 = vunpack.c.l.b16 %v138
    %v413 = vunpack.c.h.b16 %v138
    %v414 = vunpack.c.l.b16 %v139
    %v415 = vunpack.c.h.b16 %v139
    %v416 = vunpack.c.l.b16 %v140
    %v417 = vunpack.c.h.b16 %v140
    %v418 = vunpack.c.l.b16 %v141
    %v419 = vunpack.c.h.b16 %v141
    %v420 = vunpack.c.l.b16 %v142
    %v421 = vunpack.c.h.b16 %v142
    %v422 = vunpack.c.l.b16 %v143
    %v423 = vunpack.c.h.b16 %v143
    %v424 = vunpack.c.l.b16 %v144
    %v425 = vunpack.c.h.b16 %v144
    %v426 = vunpack.c.l.b16 %v145
    %v427 = vunpack.c.h.b16 %v145
    %v428 = vunpack.c.l.b16 %v146
    %v429 = vunpack.c.h.b16 %v146
    %v430 = vunpack.c.l.b16 %v147
    %v431 = vunpack.c.h.b16 %v147
    %v432 = vunpack.c.l.b16 %v148
    %v433 = vunpack.c.h.b16 %v148
    %v434 = vunpack.c.l.b16 %v149
    %v435 = vunpack.c.h.b16 %v149
    %v436 = vunpack.c.l.b16 %v150
    %v437 = vunpack.c.h.b16 %v150
    %v438 = vunpack.c.l.b16 %v151
    %v439 = vunpack.c.h.b16 %v151
    %v440 = vunpack.c.l.b16 %v152
    %v441 = vunpack.c.h.b16 %v152
    %v442 = vunpack.c.l.b16 %v153
    %v443 = vunpack.c.h.b16 %v153
    %v444 = vunpack.c.l.b16 %v154
    %v445 = vunpack.c.h.b16 %v154
    %v446 = vunpack.c.l.b16 %v155
    %v447 = vunpack.c.h.b16 %v155
    %v448 = vunpack.c.l.b16 %v156
    %v449 = vunpack.c.h.b16 %v156
    %v450 = vunpack.c.l.b16 %v157
    %v451 = vunpack.c.h.b16 %v157
    %v452 = vunpack.c.l.b16 %v158
    %v453 = vunpack.c.h.b16 %v158
    %v454 = vunpack.c.l.b16 %v159
    %v455 = vunpack.c.h.b16 %v159
    %v456 = vunpack.c.l.b16 %v160
    %v457 = vunpack.c.h.b16 %v160
    %v458 = vunpack.c.l.b16 %v161
    %v459 = vunpack.c.h.b16 %v161
    %v460 = vunpack.c.l.b16 %v162
    %v461 = vunpack.c.h.b16 %v162
    %v462 = vunpack.c.l.b16 %v163
    %v463 = vunpack.c.h.b16 %v163
    %v464 = vpack.c.b16 %v270, %v268
    %v465 = vpack.c.b16 %v271, %v269
    %v466 = vpack.c.b16 %v274, %v272
    %v467 = vpack.c.b16 %v275, %v273
    %v468 = vpack.c.b16 %v278, %v276
    %v469 = vpack.c.b16 %v279, %v277
    %v470 = vpack.c.b16 %v282, %v280
    %v471 = vpack.c.b16 %v283, %v281
    %v472 = vpack.c.b16 %v286, %v284
    %v473 = vpack.c.b16 %v287, %v285
    %v474 = vpack.c.b16 %v290, %v288
    %v475 = vpack.c.b16 %v291, %v289
    %v476 = vpack.c.b16 %v294, %v292
    %v477 = vpack.c.b16 %v295, %v293
    %v478 = vpack.c.b16 %v298, %v296
    %v479 = vpack.c.b16 %v299, %v297
    %v480 = vpack.c.b16 %v302, %v300
    %v481 = vpack.c.b16 %v303, %v301
    %v482 = vpack.c.b16 %v306, %v304
    %v483 = vpack.c.b16 %v307, %v305
    %v484 = vpack.c.b16 %v310, %v308
    %v485 = vpack.c.b16 %v311, %v309
    %v486 = vpack.c.b16 %v314, %v312
    %v487 = vpack.c.b16 %v315, %v313
    %v488 = vpack.c.b16 %v318, %v316
    %v489 = vpack.c.b16 %v319, %v317
    %v490 = vpack.c.b16 %v322, %v320
    %v491 = vpack.c.b16 %v323, %v321
    %v492 = vpack.c.b16 %v326, %v324
    %v493 = vpack.c.b16 %v327, %v325
    %v494 = vpack.c.b16 %v330, %v328
    %v495 = vpack.c.b16 %v331, %v329
    %v496 = vpack.c.b16 %v334, %v332
    %v497 = vpack.c.b16 %v335, %v333
    %v498 = vpack.c.b16 %v338, %v336
    %v499 = vpack.c.b16 %v339, %v337
    %v500 = vpack.c.b16 %v342, %v340
    %v501 = vpack.c.b16 %v343, %v341
    %v502 = vpack.c.b16 %v346, %v344
    %v503 = vpack.c.b16 %v347, %v345
    %v504 = vpack.c.b16 %v350, %v348
    %v505 = vpack.c.b16 %v351, %v349
    %v506 = vpack.c.b16 %v354, %v352
    %v507 = vpack.c.b16 %v355, %v353
    %v508 = vpack.c.b16 %v358, %v356
    %v509 = vpack.c.b16 %v359, %v357
    %v510 = vpack.c.b16 %v362, %v360
    %v511 = vpack.c.b16 %v363, %v361
    %v512 = vpack.c.b16 %v366, %v364
    %v513 = vpack.c.b16 %v367, %v365
    %v514 = vpack.c.b16 %v370, %v368
    %v515 = vpack.c.b16 %v371, %v369
    %v516 = vpack.c.b16 %v374, %v372
    %v517 = vpack.c.b16 %v375, %v373
    %v518 = vpack.c.b16 %v378, %v376
    %v519 = vpack.c.b16 %v379, %v377
    %v520 = vpack.c.b16 %v382, %v380
    %v521 = vpack.c.b16 %v383, %v381
    %v522 = vpack.c.b16 %v386, %v384
    %v523 = vpack.c.b16 %v387, %v385
    %v524 = vpack.c.b16 %v390, %v388
    %v525 = vpack.c.b16 %v391, %v389
    %v526 = vpack.c.b16 %v394, %v392
    %v527 = vpack.c.b16 %v395, %v393
    %v528 = vpack.c.b16 %v398, %v396
    %v529 = vpack.c.b16 %v399, %v397
    %v530 = vpack.c.b16 %v402, %v400
    %v531 = vpack.c.b16 %v403, %v401
    %v532 = vpack.c.b16 %v406, %v404
    %v533 = vpack.c.b16 %v407, %v405
    %v534 = vpack.c.b16 %v410, %v408
    %v535 = vpack.c.b16 %v411, %v409
    %v536 = vpack.c.b16 %v414, %v412
    %v537 = vpack.c.b16 %v415, %v413
    %v538 = vpack.c.b16 %v418, %v416
    %v539 = vpack.c.b16 %v419, %v417
    %v540 = vpack.c.b16 %v422, %v420
    %v541 = vpack.c.b16 %v423, %v421
    %v542 = vpack.c.b16 %v426, %v424
    %v543 = vpack.c.b16 %v427, %v425
    %v544 = vpack.c.b16 %v430, %v428
    %v545 = vpack.c.b16 %v431, %v429
    %v546 = vpack.c.b16 %v434, %v432
    %v547 = vpack.c.b16 %v435, %v433
    %v548 = vpack.c.b16 %v438, %v436
    %v549 = vpack.c.b16 %v439, %v437
    %v550 = vpack.c.b16 %v442, %v440
    %v551 = vpack.c.b16 %v443, %v441
    %v552 = vpack.c.b16 %v446, %v444
    %v553 = vpack.c.b16 %v447, %v445
    %v554 = vpack.c.b16 %v450, %v448
    %v555 = vpack.c.b16 %v451, %v449
    %v556 = vpack.c.b16 %v454, %v452
    %v557 = vpack.c.b16 %v455, %v453
    %v558 = vpack.c.b16 %v458, %v456
    %v559 = vpack.c.b16 %v459, %v457
    %v560 = vpack.c.b16 %v462, %v460
    %v561 = vpack.c.b16 %v463, %v461
    %vm660 = vcmask 130048
    %v662 = vsel %vm660, %v65, 0
    %664 = vmatpush.bf16.msra.mxu0 %v478
    %665 = vmatpush.bf16.msra.mxu0 %v476
    %666 = vmatpush.bf16.msra.mxu0 %v474
    %667 = vmatpush.bf16.msra.mxu0 %v472
    %668 = vmatpush.bf16.msra.mxu0 %v470
    %669 = vmatpush.bf16.msra.mxu0 %v468
    %670 = vmatpush.bf16.msra.mxu0 %v466
    %671 = vmatpush.bf16.msra.mxu0 %v464
    %672 = vmatmul.bf16.gmra.mxu0 %v59
    %v673 = vpop.f32.mrf.mxu0
    %v674 = vadd.f32 %v166, %v673
    %v675 = vpop.f32.mrf.mxu0
    %676 = vdwg.mxu0
    %677 = vmatpush.bf16.msra.mxu0 %v494
    %678 = vmatpush.bf16.msra.mxu0 %v492
    %679 = vmatpush.bf16.msra.mxu0 %v490
    %680 = vmatpush.bf16.msra.mxu0 %v488
    %681 = vmatpush.bf16.msra.mxu0 %v486
    %682 = vmatpush.bf16.msra.mxu0 %v484
    %683 = vmatpush.bf16.msra.mxu0 %v482
    %684 = vmatpush.bf16.msra.mxu0 %v480
    %685 = vmatmul.bf16.gmra.mxu0 %v60
    %v686 = vpop.f32.mrf.mxu0
    %v687 = vadd.f32 %v674, %v686
    %v688 = vpop.f32.mrf.mxu0
    %689 = vdwg.mxu0
    %690 = vmatpush.bf16.msra.mxu0 %v510
    %691 = vmatpush.bf16.msra.mxu0 %v508
    %692 = vmatpush.bf16.msra.mxu0 %v506
    %693 = vmatpush.bf16.msra.mxu0 %v504
    %694 = vmatpush.bf16.msra.mxu0 %v502
    %695 = vmatpush.bf16.msra.mxu0 %v500
    %696 = vmatpush.bf16.msra.mxu0 %v498
    %697 = vmatpush.bf16.msra.mxu0 %v496
    %698 = vmatmul.bf16.gmra.mxu0 %v61
    %v699 = vpop.f32.mrf.mxu0
    %v700 = vadd.f32 %v687, %v699
    %v701 = vpop.f32.mrf.mxu0
    %702 = vdwg.mxu0
    %703 = vmatpush.bf16.msra.mxu0 %v526
    %704 = vmatpush.bf16.msra.mxu0 %v524
    %705 = vmatpush.bf16.msra.mxu0 %v522
    %706 = vmatpush.bf16.msra.mxu0 %v520
    %707 = vmatpush.bf16.msra.mxu0 %v518
    %708 = vmatpush.bf16.msra.mxu0 %v516
    %709 = vmatpush.bf16.msra.mxu0 %v514
    %710 = vmatpush.bf16.msra.mxu0 %v512
    %711 = vmatmul.bf16.gmra.mxu0 %v62
    %v712 = vpop.f32.mrf.mxu0
    %v713 = vadd.f32 %v700, %v712
    %v714 = vpop.f32.mrf.mxu0
    %715 = vdwg.mxu0
    %716 = vmatpush.bf16.msra.mxu0 %v542
    %717 = vmatpush.bf16.msra.mxu0 %v540
    %718 = vmatpush.bf16.msra.mxu0 %v538
    %719 = vmatpush.bf16.msra.mxu0 %v536
    %720 = vmatpush.bf16.msra.mxu0 %v534
    %721 = vmatpush.bf16.msra.mxu0 %v532
    %722 = vmatpush.bf16.msra.mxu0 %v530
    %723 = vmatpush.bf16.msra.mxu0 %v528
    %724 = vmatmul.bf16.gmra.mxu0 %v63
    %v725 = vpop.f32.mrf.mxu0
    %v726 = vadd.f32 %v713, %v725
    %v727 = vpop.f32.mrf.mxu0
    %728 = vdwg.mxu0
    %729 = vmatpush.bf16.msra.mxu0 %v558
    %730 = vmatpush.bf16.msra.mxu0 %v556
    %731 = vmatpush.bf16.msra.mxu0 %v554
    %732 = vmatpush.bf16.msra.mxu0 %v552
    %733 = vmatpush.bf16.msra.mxu0 %v550
    %734 = vmatpush.bf16.msra.mxu0 %v548
    %735 = vmatpush.bf16.msra.mxu0 %v546
    %736 = vmatpush.bf16.msra.mxu0 %v544
    %737 = vmatmul.bf16.gmra.mxu0 %v64
    %v738 = vpop.f32.mrf.mxu0
    %v739 = vadd.f32 %v726, %v738
    %v740 = vpop.f32.mrf.mxu0
    %741 = vdwg.mxu0
    %742 = vmatpush.bf16.msra.mxu0 0
    %743 = vmatpush.bf16.msra.mxu0 0
    %744 = vmatpush.bf16.msra.mxu0 0
    %745 = vmatpush.bf16.msra.mxu0 0
    %746 = vmatpush.bf16.msra.mxu0 0
    %747 = vmatpush.bf16.msra.mxu0 0
    %748 = vmatpush.bf16.msra.mxu0 0
    %749 = vmatpush.bf16.msra.mxu0 %v560
    %750 = vmatmul.bf16.gmra.mxu0 %v662
    %v751 = vpop.f32.mrf.mxu0
    %v752 = vadd.f32 %v739, %v751
    %v753 = vpop.f32.mrf.mxu0
    %754 = vdwg.mxu0
    %755 = vmatpush.bf16.msra.mxu0 %v479
    %756 = vmatpush.bf16.msra.mxu0 %v477
    %757 = vmatpush.bf16.msra.mxu0 %v475
    %758 = vmatpush.bf16.msra.mxu0 %v473
    %759 = vmatpush.bf16.msra.mxu0 %v471
    %760 = vmatpush.bf16.msra.mxu0 %v469
    %761 = vmatpush.bf16.msra.mxu0 %v467
    %762 = vmatpush.bf16.msra.mxu0 %v465
    %763 = vmatmul.bf16.gmra.mxu0 %v59
    %v764 = vpop.f32.mrf.mxu0
    %v765 = vadd.f32 %v167, %v764
    %v766 = vpop.f32.mrf.mxu0
    %767 = vdwg.mxu0
    %768 = vmatpush.bf16.msra.mxu0 %v495
    %769 = vmatpush.bf16.msra.mxu0 %v493
    %770 = vmatpush.bf16.msra.mxu0 %v491
    %771 = vmatpush.bf16.msra.mxu0 %v489
    %772 = vmatpush.bf16.msra.mxu0 %v487
    %773 = vmatpush.bf16.msra.mxu0 %v485
    %774 = vmatpush.bf16.msra.mxu0 %v483
    %775 = vmatpush.bf16.msra.mxu0 %v481
    %776 = vmatmul.bf16.gmra.mxu0 %v60
    %v777 = vpop.f32.mrf.mxu0
    %v778 = vadd.f32 %v765, %v777
    %v779 = vpop.f32.mrf.mxu0
    %780 = vdwg.mxu0
    %781 = vmatpush.bf16.msra.mxu0 %v511
    %782 = vmatpush.bf16.msra.mxu0 %v509
    %783 = vmatpush.bf16.msra.mxu0 %v507
    %784 = vmatpush.bf16.msra.mxu0 %v505
    %785 = vmatpush.bf16.msra.mxu0 %v503
    %786 = vmatpush.bf16.msra.mxu0 %v501
    %787 = vmatpush.bf16.msra.mxu0 %v499
    %788 = vmatpush.bf16.msra.mxu0 %v497
    %789 = vmatmul.bf16.gmra.mxu0 %v61
    %v790 = vpop.f32.mrf.mxu0
    %v791 = vadd.f32 %v778, %v790
    %v792 = vpop.f32.mrf.mxu0
    %793 = vdwg.mxu0
    %794 = vmatpush.bf16.msra.mxu0 %v527
    %795 = vmatpush.bf16.msra.mxu0 %v525
    %796 = vmatpush.bf16.msra.mxu0 %v523
    %797 = vmatpush.bf16.msra.mxu0 %v521
    %798 = vmatpush.bf16.msra.mxu0 %v519
    %799 = vmatpush.bf16.msra.mxu0 %v517
    %800 = vmatpush.bf16.msra.mxu0 %v515
    %801 = vmatpush.bf16.msra.mxu0 %v513
    %802 = vmatmul.bf16.gmra.mxu0 %v62
    %v803 = vpop.f32.mrf.mxu0
    %v804 = vadd.f32 %v791, %v803
    %v805 = vpop.f32.mrf.mxu0
    %806 = vdwg.mxu0
    %807 = vmatpush.bf16.msra.mxu0 %v543
    %808 = vmatpush.bf16.msra.mxu0 %v541
    %809 = vmatpush.bf16.msra.mxu0 %v539
    %810 = vmatpush.bf16.msra.mxu0 %v537
    %811 = vmatpush.bf16.msra.mxu0 %v535
    %812 = vmatpush.bf16.msra.mxu0 %v533
    %813 = vmatpush.bf16.msra.mxu0 %v531
    %814 = vmatpush.bf16.msra.mxu0 %v529
    %815 = vmatmul.bf16.gmra.mxu0 %v63
    %v816 = vpop.f32.mrf.mxu0
    %v817 = vadd.f32 %v804, %v816
    %v818 = vpop.f32.mrf.mxu0
    %819 = vdwg.mxu0
    %820 = vmatpush.bf16.msra.mxu0 %v559
    %821 = vmatpush.bf16.msra.mxu0 %v557
    %822 = vmatpush.bf16.msra.mxu0 %v555
    %823 = vmatpush.bf16.msra.mxu0 %v553
    %824 = vmatpush.bf16.msra.mxu0 %v551
    %825 = vmatpush.bf16.msra.mxu0 %v549
    %826 = vmatpush.bf16.msra.mxu0 %v547
    %827 = vmatpush.bf16.msra.mxu0 %v545
    %828 = vmatmul.bf16.gmra.mxu0 %v64
    %v829 = vpop.f32.mrf.mxu0
    %v830 = vadd.f32 %v817, %v829
    %v831 = vpop.f32.mrf.mxu0
    %832 = vdwg.mxu0
    %833 = vmatpush.bf16.msra.mxu0 0
    %834 = vmatpush.bf16.msra.mxu0 0
    %835 = vmatpush.bf16.msra.mxu0 0
    %836 = vmatpush.bf16.msra.mxu0 0
    %837 = vmatpush.bf16.msra.mxu0 0
    %838 = vmatpush.bf16.msra.mxu0 0
    %839 = vmatpush.bf16.msra.mxu0 0
    %840 = vmatpush.bf16.msra.mxu0 %v561
    %841 = vmatmul.bf16.gmra.mxu0 %v662
    %v842 = vpop.f32.mrf.mxu0
    %v843 = vadd.f32 %v830, %v842
    %v844 = vpop.f32.mrf.mxu0
    %845 = vdwg.mxu0
    %v846 = vpack.c.bf16 %v752, %v752
    %v847 = vpack.c.bf16 %v843, %v843
    %v848 = vld [vmem:[%s3] sm:$0xf]
    %v849 = vld [vmem:[%s3 + $0x4] sm:$0xf]
    %v850 = vld [vmem:[%s3 + $0x8] sm:$0xf]
    %v851 = vld [vmem:[%s3 + $0xc] sm:$0xf]
    %v852 = vld [vmem:[%s3 + $0x10] sm:$0xf]
    %v853 = vld [vmem:[%s3 + $0x14] sm:$0xf]
    %v854 = vld [vmem:[%s3 + $0x18] sm:$0xf]
    %v855 = vld [vmem:[%s3 + $0x1c] sm:$0xf]
    %v856 = vld [vmem:[%s3 + $0x20] sm:$0xf]
    %v857 = vld [vmem:[%s3 + $0x24] sm:$0xf]
    %v858 = vld [vmem:[%s3 + $0x28] sm:$0xf]
    %v859 = vld [vmem:[%s3 + $0x2c] sm:$0xf]
    %v860 = vld [vmem:[%s3 + $0x30] sm:$0xf]
    %v861 = vld [vmem:[%s3 + $0x34] sm:$0xf]
    %v862 = vld [vmem:[%s3 + $0x38] sm:$0xf]
    %v863 = vld [vmem:[%s3 + $0x3c] sm:$0xf]
    %v864 = vld [vmem:[%s3 + $0x40] sm:$0xf]
    %v865 = vld [vmem:[%s3 + $0x44] sm:$0xf]
    %v866 = vld [vmem:[%s3 + $0x48] sm:$0xf]
    %v867 = vld [vmem:[%s3 + $0x4c] sm:$0xf]
    %v868 = vld [vmem:[%s3 + $0x50] sm:$0xf]
    %v869 = vld [vmem:[%s3 + $0x54] sm:$0xf]
    %v870 = vld [vmem:[%s3 + $0x58] sm:$0xf]
    %v871 = vld [vmem:[%s3 + $0x5c] sm:$0xf]
    %v872 = vld [vmem:[%s3 + $0x60] sm:$0xf]
    %v873 = vld [vmem:[%s3 + $0x64] sm:$0xf]
    %v874 = vld [vmem:[%s3 + $0x68] sm:$0xf]
    %v875 = vld [vmem:[%s3 + $0x6c] sm:$0xf]
    %v876 = vld [vmem:[%s3 + $0x70] sm:$0xf]
    %v877 = vld [vmem:[%s3 + $0x74] sm:$0xf]
    %v878 = vld [vmem:[%s3 + $0x78] sm:$0xf]
    %v879 = vld [vmem:[%s3 + $0x7c] sm:$0xf]
    %v880 = vld [vmem:[%s4] sm:$0x1]
    %v882 = vperm.slane %v880, 0
    %v916 = vunpack.c.l.b16 %v848
    %v917 = vunpack.c.l.b16 %v849
    %v918 = vunpack.c.l.b16 %v850
    %v919 = vunpack.c.l.b16 %v851
    %v920 = vunpack.c.l.b16 %v852
    %v921 = vunpack.c.l.b16 %v853
    %v922 = vunpack.c.l.b16 %v854
    %v923 = vunpack.c.l.b16 %v855
    %v924 = vunpack.c.l.b16 %v856
    %v925 = vunpack.c.l.b16 %v857
    %v926 = vunpack.c.l.b16 %v858
    %v927 = vunpack.c.l.b16 %v859
    %v928 = vunpack.c.l.b16 %v860
    %v929 = vunpack.c.l.b16 %v861
    %v930 = vunpack.c.l.b16 %v862
    %v931 = vunpack.c.l.b16 %v863
    %v932 = vunpack.c.l.b16 %v864
    %v933 = vunpack.c.l.b16 %v865
    %v934 = vunpack.c.l.b16 %v866
    %v935 = vunpack.c.l.b16 %v867
    %v936 = vunpack.c.l.b16 %v868
    %v937 = vunpack.c.l.b16 %v869
    %v938 = vunpack.c.l.b16 %v870
    %v939 = vunpack.c.l.b16 %v871
    %v940 = vunpack.c.l.b16 %v872
    %v941 = vunpack.c.l.b16 %v873
    %v942 = vunpack.c.l.b16 %v874
    %v943 = vunpack.c.l.b16 %v875
    %v944 = vunpack.c.l.b16 %v876
    %v945 = vunpack.c.l.b16 %v877
    %v946 = vunpack.c.l.b16 %v878
    %v947 = vunpack.c.l.b16 %v879
    %v948 = vpack.c.b16 %v917, %v916
    %v949 = vpack.c.b16 %v919, %v918
    %v950 = vpack.c.b16 %v921, %v920
    %v951 = vpack.c.b16 %v923, %v922
    %v952 = vpack.c.b16 %v925, %v924
    %v953 = vpack.c.b16 %v927, %v926
    %v954 = vpack.c.b16 %v929, %v928
    %v955 = vpack.c.b16 %v931, %v930
    %v956 = vpack.c.b16 %v933, %v932
    %v957 = vpack.c.b16 %v935, %v934
    %v958 = vpack.c.b16 %v937, %v936
    %v959 = vpack.c.b16 %v939, %v938
    %v960 = vpack.c.b16 %v941, %v940
    %v961 = vpack.c.b16 %v943, %v942
    %v962 = vpack.c.b16 %v945, %v944
    %v963 = vpack.c.b16 %v947, %v946
    %980 = vmatpush.bf16.msra.mxu0 %v955
    %981 = vmatpush.bf16.msra.mxu0 %v954
    %982 = vmatpush.bf16.msra.mxu0 %v953
    %983 = vmatpush.bf16.msra.mxu0 %v952
    %984 = vmatpush.bf16.msra.mxu0 %v951
    %985 = vmatpush.bf16.msra.mxu0 %v950
    %986 = vmatpush.bf16.msra.mxu0 %v949
    %987 = vmatpush.bf16.msra.mxu0 %v948
    %988 = vmatmul.bf16.gmra.mxu0 %v846
    %v989 = vpop.f32.mrf.mxu0
    %v990 = vadd.f32 %v882, %v989
    %v991 = vpop.f32.mrf.mxu0
    %992 = vdwg.mxu0
    %993 = vmatpush.bf16.msra.mxu0 %v963
    %994 = vmatpush.bf16.msra.mxu0 %v962
    %995 = vmatpush.bf16.msra.mxu0 %v961
    %996 = vmatpush.bf16.msra.mxu0 %v960
    %997 = vmatpush.bf16.msra.mxu0 %v959
    %998 = vmatpush.bf16.msra.mxu0 %v958
    %999 = vmatpush.bf16.msra.mxu0 %v957
    %1000 = vmatpush.bf16.msra.mxu0 %v956
    %1001 = vmatmul.bf16.gmra.mxu0 %v847
    %v1002 = vpop.f32.mrf.mxu0
    %v1003 = vadd.f32 %v990, %v1002
    %v1004 = vpop.f32.mrf.mxu0
    %1005 = vdwg.mxu0
    %vm1006 = vcmask 74752
    %1007 = vst.msk [vmem:[#allocation5] sm:$0x3] %vm1006, %v1003
    // Predicated region
    $region26: #{mlp_forward.1} parent=1 // pred_check
      _
    $region27: #{mlp_forward.1} parent=1 // pred_check_branch
      %1009 = sbr.rel (0) target = $region29
    $region28: #{mlp_forward.1} parent=1 // pred_region
      %1011 = vsyncadd [#allocation4], 0
      %s1013 = sshll.u32 [#allocation5], 4
      %s1014 = int_to_ptr.vmem [resolvable:$true] %s1013
      %s1015 = sshll.u32 %s5, 4
      %s1016 = int_to_ptr.hbm [resolvable:$true] %s1015
      %1018 = dma.vmem_to_hbm [thread:$0]  %s1014, 32, %s1016, [#allocation4]
    $region29: #{mlp_forward.1} parent=1 // pred_fallthru
      _
    // Predicated region
    $region30: #{mlp_forward.1} parent=1 // pred_check
      _
    $region31: #{mlp_forward.1} parent=1 // pred_check_branch
      %1020 = sbr.rel (0) target = $region33
    $region32: #{mlp_forward.1} parent=1 // pred_region
      %1022 = dma.done [#allocation4], 32
    $region33: #{mlp_forward.1} parent=1 // pred_fallthru
      _
    %1023 = vsyncpa [#allocation3], 1
    %1024 = vsyncpa [#allocation4], 1

</llo_original>
